<compile_context>
chip_gen: v5e
topology: v5e:2x2
jax: 0.10.0
libtpu: 0.0.40
codegen_flags: <defaults>
</compile_context>

<pallas_src>
import functools
import math

import jax
import jax.numpy as jnp
from jax import lax
from jax.experimental import pallas as pl
from jax.experimental.pallas import tpu as pltpu


def _pool_right(size):
    """(size, size//2) matrix Q with Q[2j, j] = Q[2j+1, j] = 0.5 (pools columns when right-multiplied)."""
    r = lax.broadcasted_iota(jnp.int32, (size, size // 2), 0)
    c = lax.broadcasted_iota(jnp.int32, (size, size // 2), 1)
    return jnp.where(r // 2 == c, 0.5, 0.0).astype(jnp.float32)


def _image_recover_loss_kernel(g_ref, o_ref, *rest, coefs):
    # g_ref, o_ref: (B_blk*H, W) blocks (B_blk images, batch folded into rows).
    # rest = (pc_0, ..., pc_{S-1}, out_ref, dbuf); out_ref: (1,1,1); dbuf: (B_blk*H, W) f32 scratch.
    dbuf = rest[-1]
    out_ref = rest[-2]
    pc_refs = rest[:-2]

    rows, cols = g_ref.shape

    # Pooling is linear: pool the difference once instead of g and o separately.
    # Cast to f32 in-kernel (inputs may be bf16 in HBM); scratch is f32 so the
    # stride-2 sublane loads below operate on unpacked 32-bit rows.
    dbuf[...] = g_ref[...].astype(jnp.float32) - o_ref[...].astype(jnp.float32)

    loss = jnp.zeros((1, 1), dtype=jnp.float32)
    for k, coef in enumerate(coefs):  # static unroll over scales (cumulative pooling)
        half = rows // 2
        # Row pool: exact strided sublane adds (VPU), no MXU work. Row pairs never
        # straddle images because every per-image height stays even at each scale.
        even = dbuf[pl.ds(0, half, stride=2), pl.ds(0, cols)]
        odd = dbuf[pl.ds(1, half, stride=2), pl.ds(0, cols)]
        rp = (even + odd) * 0.5                                    # (half, cols)
        # Column pool: one MXU matmul, M = B_blk*H_k/2 (batch folded into M).
        pooled = jnp.dot(rp, pc_refs[k][...],
                         preferred_element_type=jnp.float32)       # (half, cols//2)
        rows, cols = half, cols // 2
        # coef folds weight_k / (N_true * H_k * W_k); accumulate per-block partial loss.
        loss = loss + coef * jnp.sum(jnp.abs(pooled), keepdims=True)
        if k + 1 < len(coefs):
            dbuf[pl.ds(0, rows), pl.ds(0, cols)] = pooled
    out_ref[0] = loss


def image_recover_loss(generP, oriP, loss_weight_per_scale):
    """Pallas implementation of ImageRecoverLoss.forward (returns a scalar)."""
    assert generP.shape == oriP.shape
    n, c, h, w = generP.shape
    # The torch module cats generP/oriP (channel dim) and compares channel 0 vs 1,
    # which only makes sense for single-channel inputs.
    assert c == 1, "kernel assumes single-channel generP / oriP"
    scales = len(loss_weight_per_scale)
    assert h % (2 ** scales) == 0 and w % (2 ** scales) == 0

    # 2D row-major views (batch folded into rows). Keep the original dtype: the f32
    # cast happens in-kernel so bf16 inputs don't double HBM->VMEM traffic.
    g2 = generP.reshape(n * h, w)
    o2 = oriP.reshape(n * h, w)

    # Choose images per grid step: amortize per-step overhead and fill the MXU M dim,
    # while keeping the f32 scratch + double-buffered input blocks small in VMEM.
    itemsize = jnp.dtype(generP.dtype).itemsize
    rows_budget = max(h, (4 << 20) // (w * max(itemsize, 4)))
    b_blk = max(1, min(n, rows_budget // h))
    sub = 8 // math.gcd(h, 8)             # make b_blk*h a multiple of 8 (sublane tile)
    b_blk = max(sub, (b_blk // sub) * sub)
    num_blocks = pl.cdiv(n, b_blk)
    n_pad = num_blocks * b_blk
    if n_pad != n:                         # zero-padded images contribute |0| = 0
        pad_rows = (n_pad - n) * h
        g2 = jnp.pad(g2, ((0, pad_rows), (0, 0)))
        o2 = jnp.pad(o2, ((0, pad_rows), (0, 0)))
    rows0 = b_blk * h

    # Precompute column-pool matrices once (wrapper side) and static per-scale coefficients.
    pcs, coefs = [], []
    ch, cw = h, w
    for wt in loss_weight_per_scale:
        pcs.append(_pool_right(cw))
        ch, cw = ch // 2, cw // 2
        coefs.append(float(wt) / float(n * ch * cw))  # divisor N_true * H_k * W_k (post-pool)

    kernel = functools.partial(_image_recover_loss_kernel, coefs=tuple(coefs))

    img_spec = pl.BlockSpec((rows0, w), lambda i: (i, 0))
    # Full-array blocks with constant index maps: stay resident in VMEM across grid steps.
    pc_specs = [pl.BlockSpec(m.shape, lambda i: (0, 0)) for m in pcs]

    # Explicit VMEM budget: 2 inputs x 2 buffers x block + f32 scratch + pool mats, with headroom.
    need = (2 * 2 * rows0 * w * itemsize
            + rows0 * w * 4
            + 2 * 4 * sum(int(m.size) for m in pcs))
    vmem_limit = int(min(max(4 * need, 16 << 20), 48 << 20))

    out = pl.pallas_call(
        kernel,
        out_shape=jax.ShapeDtypeStruct((num_blocks, 1, 1), jnp.float32),
        grid=(num_blocks,),
        in_specs=[img_spec, img_spec] + pc_specs,
        out_specs=pl.BlockSpec((1, 1, 1), lambda i: (i, 0, 0)),
        scratch_shapes=[pltpu.VMEM((rows0, w), jnp.float32)],
        compiler_params=pltpu.CompilerParams(
            # Per-block output (no shared accumulator) -> batch-block axis can be parallel.
            dimension_semantics=("parallel",),
            vmem_limit_bytes=vmem_limit,
        ),
    )(g2, o2, *pcs)
    # Tiny batch-block reduce in the wrapper (weights / divisors already folded in-kernel).
    return jnp.sum(out)


def reference_loss(generP, oriP, weights):
    """Pure-JAX transcription of the PyTorch forward, for verification."""
    z = jnp.concatenate([generP, oriP], axis=1).astype(jnp.float32)
    loss = jnp.float32(0.0)
    for wt in weights:
        n, c, hh, ww = z.shape
        z = z.reshape(n, c, hh // 2, 2, ww // 2, 2).mean(axis=(3, 5))  # AvgPool2d(2,2,0)
        loss_ = jnp.abs(z[:, 0] - z[:, 1]).sum() / (z.shape[0] * z.shape[2] * z.shape[3])
        loss = loss + loss_ * wt
    return loss


if __name__ == "__main__":
    # Deterministic "parameters": the module's only config is loss_weight_per_scale.
    loss_weight_per_scale = (1.0, 0.5, 0.25)

    key = jax.random.PRNGKey(0)
    k1, k2 = jax.random.split(key)
    N, C, H, W = 2, 1, 16, 16
    generP = jax.random.uniform(k1, (N, C, H, W), dtype=jnp.float32)
    oriP = jax.random.uniform(k2, (N, C, H, W), dtype=jnp.float32)

    out = image_recover_loss(generP, oriP, loss_weight_per_scale)
    out = jax.block_until_ready(out)

    ref = reference_loss(generP, oriP, loss_weight_per_scale)
    assert jnp.allclose(out, ref, rtol=1e-5, atol=1e-6), (out, ref)
    print("KERNEL_OK")
</pallas_src>

<mosaic_0001>
module attributes {stable_mosaic.version = 11 : i64} {
  func.func @_image_recover_loss_kernel(%arg0: i32, %arg1: memref<32x16xf32, #tpu.memory_space<vmem>>, %arg2: memref<32x16xf32, #tpu.memory_space<vmem>>, %arg3: memref<16x8xf32, #tpu.memory_space<vmem>>, %arg4: memref<8x4xf32, #tpu.memory_space<vmem>>, %arg5: memref<4x2xf32, #tpu.memory_space<vmem>>, %arg6: memref<1x1x1xf32, #tpu.memory_space<vmem>>, %arg7: memref<32x16xf32, #tpu.memory_space<vmem>>) attributes {dimension_semantics = [#tpu.dimension_semantics<parallel>], iteration_bounds = array<i64: 1>, scalar_prefetch = 0 : i64, scratch_operands = 1 : i64, tpu.core_type = #tpu.core_type<tc>, window_params = [{transform_indices = @transform_0, window_bounds = array<i64: 32, 16>}, {transform_indices = @transform_1, window_bounds = array<i64: 32, 16>}, {pipeline_mode = #tpu.pipeline_mode<synchronous>, transform_indices = @transform_2, window_bounds = array<i64: 16, 8>}, {pipeline_mode = #tpu.pipeline_mode<synchronous>, transform_indices = @transform_3, window_bounds = array<i64: 8, 4>}, {pipeline_mode = #tpu.pipeline_mode<synchronous>, transform_indices = @transform_4, window_bounds = array<i64: 4, 2>}, {transform_indices = @transform_5, window_bounds = array<i64: 1, 1, 1>}]} {
    %c0 = arith.constant 0 : index
    %c0_0 = arith.constant 0 : index
    %0 = vector.load %arg1[%c0, %c0_0] : memref<32x16xf32, #tpu.memory_space<vmem>>, vector<32x16xf32>
    %c0_1 = arith.constant 0 : index
    %c0_2 = arith.constant 0 : index
    %1 = vector.load %arg2[%c0_1, %c0_2] : memref<32x16xf32, #tpu.memory_space<vmem>>, vector<32x16xf32>
    %2 = arith.subf %0, %1 : vector<32x16xf32>
    %c0_3 = arith.constant 0 : index
    %c0_4 = arith.constant 0 : index
    %3 = vector.load %arg7[%c0_3, %c0_4] : memref<32x16xf32, #tpu.memory_space<vmem>>, vector<32x16xf32>
    tpu.vector_store %arg7[%c0_3, %c0_4], %2 {strides = array<i32>} : memref<32x16xf32, #tpu.memory_space<vmem>>, vector<32x16xf32>,
    %cst = arith.constant 0.000000e+00 : f32
    %4 = vector.broadcast %cst : f32 to vector<1x1xf32>
    %c0_5 = arith.constant 0 : index
    %c0_6 = arith.constant 0 : index
    %5 = tpu.strided_load %arg7[%c0_5, %c0_6] {strides = array<i32: 2, 1>} : memref<32x16xf32, #tpu.memory_space<vmem>>, vector<16x16xf32>
    %c1 = arith.constant 1 : index
    %c0_7 = arith.constant 0 : index
    %6 = tpu.strided_load %arg7[%c1, %c0_7] {strides = array<i32: 2, 1>} : memref<32x16xf32, #tpu.memory_space<vmem>>, vector<16x16xf32>
    %7 = arith.addf %5, %6 : vector<16x16xf32>
    %cst_8 = arith.constant 5.000000e-01 : f32
    %8 = vector.broadcast %cst_8 : f32 to vector<16x16xf32>
    %9 = arith.mulf %7, %8 : vector<16x16xf32>
    %c0_9 = arith.constant 0 : index
    %c0_10 = arith.constant 0 : index
    %10 = vector.load %arg3[%c0_9, %c0_10] : memref<16x8xf32, #tpu.memory_space<vmem>>, vector<16x8xf32>
    %cst_11 = arith.constant dense<0.000000e+00> : vector<16x8xf32>
    %11 = tpu.matmul %9, %10, %cst_11 {dimension_numbers = #tpu.dot_dimension_numbers<[1], [0], [0], [1], [0, 0, 1, 1], [], []>} : vector<16x16xf32>, vector<16x8xf32>, vector<16x8xf32> -> vector<16x8xf32>
    %12 = math.absf %11 : vector<16x8xf32>
    %13 = vector.shape_cast %12 : vector<16x8xf32> to vector<1x16x8xf32>
    %cst_12 = arith.constant dense<0.000000e+00> : vector<1xf32>
    %14 = vector.multi_reduction <add>, %13, %cst_12 [1, 2] : vector<1x16x8xf32> to vector<1xf32>
    %15 = vector.shape_cast %14 : vector<1xf32> to vector<1x1x1xf32>
    %16 = vector.extract %15[0, 0, 0] : f32 from vector<1x1x1xf32>
    %17 = vector.broadcast %16 : f32 to vector<1x1xf32>
    %cst_13 = arith.constant 7.812500e-03 : f32
    %18 = vector.broadcast %cst_13 : f32 to vector<1x1xf32>
    %19 = arith.mulf %18, %17 : vector<1x1xf32>
    %20 = arith.addf %4, %19 : vector<1x1xf32>
    %c0_14 = arith.constant 0 : index
    %c0_15 = arith.constant 0 : index
    %21 = vector.load %arg7[%c0_14, %c0_15] : memref<32x16xf32, #tpu.memory_space<vmem>>, vector<16x8xf32>
    tpu.vector_store %arg7[%c0_14, %c0_15], %11 {strides = array<i32>} : memref<32x16xf32, #tpu.memory_space<vmem>>, vector<16x8xf32>,
    %c0_16 = arith.constant 0 : index
    %c0_17 = arith.constant 0 : index
    %22 = tpu.strided_load %arg7[%c0_16, %c0_17] {strides = array<i32: 2, 1>} : memref<32x16xf32, #tpu.memory_space<vmem>>, vector<8x8xf32>
    %c1_18 = arith.constant 1 : index
    %c0_19 = arith.constant 0 : index
    %23 = tpu.strided_load %arg7[%c1_18, %c0_19] {strides = array<i32: 2, 1>} : memref<32x16xf32, #tpu.memory_space<vmem>>, vector<8x8xf32>
    %24 = arith.addf %22, %23 : vector<8x8xf32>
    %cst_20 = arith.constant 5.000000e-01 : f32
    %25 = vector.broadcast %cst_20 : f32 to vector<8x8xf32>
    %26 = arith.mulf %24, %25 : vector<8x8xf32>
    %c0_21 = arith.constant 0 : index
    %c0_22 = arith.constant 0 : index
    %27 = vector.load %arg4[%c0_21, %c0_22] : memref<8x4xf32, #tpu.memory_space<vmem>>, vector<8x4xf32>
    %cst_23 = arith.constant dense<0.000000e+00> : vector<8x4xf32>
    %28 = tpu.matmul %26, %27, %cst_23 {dimension_numbers = #tpu.dot_dimension_numbers<[1], [0], [0], [1], [0, 0, 1, 1], [], []>} : vector<8x8xf32>, vector<8x4xf32>, vector<8x4xf32> -> vector<8x4xf32>
    %29 = math.absf %28 : vector<8x4xf32>
    %30 = vector.shape_cast %29 : vector<8x4xf32> to vector<1x8x4xf32>
    %cst_24 = arith.constant dense<0.000000e+00> : vector<1xf32>
    %31 = vector.multi_reduction <add>, %30, %cst_24 [1, 2] : vector<1x8x4xf32> to vector<1xf32>
    %32 = vector.shape_cast %31 : vector<1xf32> to vector<1x1x1xf32>
    %33 = vector.extract %32[0, 0, 0] : f32 from vector<1x1x1xf32>
    %34 = vector.broadcast %33 : f32 to vector<1x1xf32>
    %cst_25 = arith.constant 1.562500e-02 : f32
    %35 = vector.broadcast %cst_25 : f32 to vector<1x1xf32>
    %36 = arith.mulf %35, %34 : vector<1x1xf32>
    %37 = arith.addf %20, %36 : vector<1x1xf32>
    %c0_26 = arith.constant 0 : index
    %c0_27 = arith.constant 0 : index
    %38 = vector.load %arg7[%c0_26, %c0_27] : memref<32x16xf32, #tpu.memory_space<vmem>>, vector<8x4xf32>
    tpu.vector_store %arg7[%c0_26, %c0_27], %28 {strides = array<i32>} : memref<32x16xf32, #tpu.memory_space<vmem>>, vector<8x4xf32>,
    %c0_28 = arith.constant 0 : index
    %c0_29 = arith.constant 0 : index
    %39 = tpu.strided_load %arg7[%c0_28, %c0_29] {strides = array<i32: 2, 1>} : memref<32x16xf32, #tpu.memory_space<vmem>>, vector<4x4xf32>
    %c1_30 = arith.constant 1 : index
    %c0_31 = arith.constant 0 : index
    %40 = tpu.strided_load %arg7[%c1_30, %c0_31] {strides = array<i32: 2, 1>} : memref<32x16xf32, #tpu.memory_space<vmem>>, vector<4x4xf32>
    %41 = arith.addf %39, %40 : vector<4x4xf32>
    %cst_32 = arith.constant 5.000000e-01 : f32
    %42 = vector.broadcast %cst_32 : f32 to vector<4x4xf32>
    %43 = arith.mulf %41, %42 : vector<4x4xf32>
    %c0_33 = arith.constant 0 : index
    %c0_34 = arith.constant 0 : index
    %44 = vector.load %arg5[%c0_33, %c0_34] : memref<4x2xf32, #tpu.memory_space<vmem>>, vector<4x2xf32>
    %cst_35 = arith.constant dense<0.000000e+00> : vector<4x2xf32>
    %45 = tpu.matmul %43, %44, %cst_35 {dimension_numbers = #tpu.dot_dimension_numbers<[1], [0], [0], [1], [0, 0, 1, 1], [], []>} : vector<4x4xf32>, vector<4x2xf32>, vector<4x2xf32> -> vector<4x2xf32>
    %46 = math.absf %45 : vector<4x2xf32>
    %47 = vector.shape_cast %46 : vector<4x2xf32> to vector<1x4x2xf32>
    %cst_36 = arith.constant dense<0.000000e+00> : vector<1xf32>
    %48 = vector.multi_reduction <add>, %47, %cst_36 [1, 2] : vector<1x4x2xf32> to vector<1xf32>
    %49 = vector.shape_cast %48 : vector<1xf32> to vector<1x1x1xf32>
    %50 = vector.extract %49[0, 0, 0] : f32 from vector<1x1x1xf32>
    %51 = vector.broadcast %50 : f32 to vector<1x1xf32>
    %cst_37 = arith.constant 3.125000e-02 : f32
    %52 = vector.broadcast %cst_37 : f32 to vector<1x1xf32>
    %53 = arith.mulf %52, %51 : vector<1x1xf32>
    %54 = arith.addf %37, %53 : vector<1x1xf32>
    %c0_38 = arith.constant 0 : index
    %c0_39 = arith.constant 0 : index
    %c0_40 = arith.constant 0 : index
    %55 = vector.load %arg6[%c0_38, %c0_39, %c0_40] : memref<1x1x1xf32, #tpu.memory_space<vmem>>, vector<1x1x1xf32>
    %56 = vector.shape_cast %55 : vector<1x1x1xf32> to vector<1x1xf32>
    %57 = vector.shape_cast %54 : vector<1x1xf32> to vector<1x1x1xf32>
    tpu.vector_store %arg6[%c0_38, %c0_39, %c0_40], %57 {strides = array<i32>} : memref<1x1x1xf32, #tpu.memory_space<vmem>>, vector<1x1x1xf32>,
    return
  }
  func.func @transform_0(%arg0: i32) -> (i32, i32) {
    %c0_i32 = arith.constant 0 : i32
    %c0_i32_0 = arith.constant 0 : i32
    return %arg0, %c0_i32 : i32, i32
  }
  func.func @transform_1(%arg0: i32) -> (i32, i32) {
    %c0_i32 = arith.constant 0 : i32
    %c0_i32_0 = arith.constant 0 : i32
    return %arg0, %c0_i32 : i32, i32
  }
  func.func @transform_2(%arg0: i32) -> (i32, i32) {
    %c0_i32 = arith.constant 0 : i32
    %c0_i32_0 = arith.constant 0 : i32
    %c0_i32_1 = arith.constant 0 : i32
    return %c0_i32, %c0_i32_0 : i32, i32
  }
  func.func @transform_3(%arg0: i32) -> (i32, i32) {
    %c0_i32 = arith.constant 0 : i32
    %c0_i32_0 = arith.constant 0 : i32
    %c0_i32_1 = arith.constant 0 : i32
    return %c0_i32, %c0_i32_0 : i32, i32
  }
  func.func @transform_4(%arg0: i32) -> (i32, i32) {
    %c0_i32 = arith.constant 0 : i32
    %c0_i32_0 = arith.constant 0 : i32
    %c0_i32_1 = arith.constant 0 : i32
    return %c0_i32, %c0_i32_0 : i32, i32
  }
  func.func @transform_5(%arg0: i32) -> (i32, i32, i32) {
    %c0_i32 = arith.constant 0 : i32
    %c0_i32_0 = arith.constant 0 : i32
    %c0_i32_1 = arith.constant 0 : i32
    return %arg0, %c0_i32, %c0_i32_0 : i32, i32, i32
  }
}

</mosaic_0001>

<llo_original>
// kernel: tpu_custom_call.1
$region0: #{tpu_custom_call.1}
  #allocation0 [shape = 'u32[]', space=smem, size = 0x4, offset = 0x4, fixed_abs, tag = 'smem constant byte address 0x4 - core index']
  #allocation1 [shape = 'u32[72,128]{1,0:T(1,128)}', space=vmem, size = 0x9000, scoped, tag = 'internal scratch']
  #allocation2 [shape = 'f32[32,16]{1,0:T(8,128)}', space=vmem, size = 0x4000, scoped, tag = 'scratch operand']
  %s0 = inlined_call_operand.vmem [shape: f32[32,16], index: 0, kind: input, shape index: {}]
  %s1 = inlined_call_operand.vmem [shape: f32[32,16], index: 1, kind: input, shape index: {}]
  %s2 = inlined_call_operand.vmem [shape: f32[16,8], index: 2, kind: input, shape index: {}]
  %s3 = inlined_call_operand.vmem [shape: f32[8,4], index: 3, kind: input, shape index: {}]
  %s4 = inlined_call_operand.vmem [shape: f32[4,2], index: 4, kind: input, shape index: {}]
  %s5 = inlined_call_operand.hbm [shape: f32[1,1,1], index: 5, kind: output, shape index: {}]
  %s6 = sld [smem:[#allocation0]]
  $region30: #{tpu_custom_call.1} parent=0
    _
  %s8 = ssub.s32 1, %s6
  %s9 = scalar_select 0, %s8, %s6
  $region1: #{tpu_custom_call.1} parent=0
    #allocation3 [shape = 'u8[512]{0}', space=vmem, size = 0x400, scoped, tag = 'output window, operand 0, single buffered']
    #allocation4 [shape = 's32[1]{0}', space=sflag, size = 0x4, scoped, tag = 'scoped memory for tpu_custom_call.1']
    %10 = vsyncpa [#allocation4], 0
    // Predicated region
    $region2: #{tpu_custom_call.1} parent=1 // pred_check
      _
    $region3: #{tpu_custom_call.1} parent=1 // pred_check_branch
      %12 = sbr.rel (0) target = $region5
    $region4: #{tpu_custom_call.1} parent=1 // pred_region
      _
    $region5: #{tpu_custom_call.1} parent=1 // pred_fallthru
      _
    // Predicated region
    $region6: #{tpu_custom_call.1} parent=1 // pred_check
      _
    $region7: #{tpu_custom_call.1} parent=1 // pred_check_branch
      %14 = sbr.rel (0) target = $region9
    $region8: #{tpu_custom_call.1} parent=1 // pred_region
      _
    $region9: #{tpu_custom_call.1} parent=1 // pred_fallthru
      _
    // Predicated region
    $region10: #{tpu_custom_call.1} parent=1 // pred_check
      _
    $region11: #{tpu_custom_call.1} parent=1 // pred_check_branch
      %16 = sbr.rel (0) target = $region13
    $region12: #{tpu_custom_call.1} parent=1 // pred_region
      _
    $region13: #{tpu_custom_call.1} parent=1 // pred_fallthru
      _
    // Predicated region
    $region14: #{tpu_custom_call.1} parent=1 // pred_check
      _
    $region15: #{tpu_custom_call.1} parent=1 // pred_check_branch
      %18 = sbr.rel (0) target = $region17
    $region16: #{tpu_custom_call.1} parent=1 // pred_region
      _
    $region17: #{tpu_custom_call.1} parent=1 // pred_fallthru
      _
    // Predicated region
    $region18: #{tpu_custom_call.1} parent=1 // pred_check
      _
    $region19: #{tpu_custom_call.1} parent=1 // pred_check_branch
      %20 = sbr.rel (0) target = $region21
    $region20: #{tpu_custom_call.1} parent=1 // pred_region
      _
    $region21: #{tpu_custom_call.1} parent=1 // pred_fallthru
      _
    %v21 = vld [vmem:[%s0] sm:$0xff]
    %v22 = vld [vmem:[%s0 + $0x8] sm:$0xff]
    %v23 = vld [vmem:[%s0 + $0x10] sm:$0xff]
    %v24 = vld [vmem:[%s0 + $0x18] sm:$0xff]
    %v25 = vld [vmem:[%s1] sm:$0xff]
    %v26 = vld [vmem:[%s1 + $0x8] sm:$0xff]
    %v27 = vld [vmem:[%s1 + $0x10] sm:$0xff]
    %v28 = vld [vmem:[%s1 + $0x18] sm:$0xff]
    %v29 = vsub.f32 %v21, %v25
    %v30 = vsub.f32 %v22, %v26
    %v31 = vsub.f32 %v23, %v27
    %v32 = vsub.f32 %v24, %v28
    %vm33 = vcmask 130048
    %34 = vst.msk [vmem:[#allocation2] sm:$0xff] %vm33, %v29
    %35 = vst.msk [vmem:[#allocation2 + $0x8] sm:$0xff] %vm33, %v30
    %36 = vst.msk [vmem:[#allocation2 + $0x10] sm:$0xff] %vm33, %v31
    %37 = vst.msk [vmem:[#allocation2 + $0x18] sm:$0xff] %vm33, %v32
    %v38 = vld [vmem:[#allocation2] ss:$2 sm:$0xff]
    %s39 = scalar_lea.vmem [#allocation2], 16
    %v40 = vld [vmem:[%s39] ss:$2 sm:$0xff]
    %s41 = scalar_lea.vmem [#allocation2], 1
    %v42 = vld [vmem:[%s41] ss:$2 sm:$0xff]
    %s43 = scalar_lea.vmem [#allocation2], 17
    %v44 = vld [vmem:[%s43] ss:$2 sm:$0xff]
    %v45 = vadd.f32 %v38, %v42
    %v46 = vadd.f32 %v40, %v44
    %v47 = vmul.f32 %v45, 0.5
    %v48 = vmul.f32 %v46, 0.5
    %v49 = vld [vmem:[%s2] sm:$0xff]
    %v50 = vld [vmem:[%s2 + $0x8] sm:$0xff]
    %v52 = vsel %vm33, %v47, 0
    %v55 = vsel %vm33, %v48, 0
    %57 = vmatpush.msra.mxu0 0.0
    %58 = vmatpush.msra.mxu0 0.0
    %59 = vmatpush.msra.mxu0 0.0
    %60 = vmatpush.msra.mxu0 0.0
    %61 = vmatpush.msra.mxu0 0.0
    %62 = vmatpush.msra.mxu0 0.0
    %63 = vmatpush.msra.mxu0 0.0
    %64 = vmatpush.msra.mxu0 0.0
    %65 = vmatpush.msra.mxu0 0.0
    %66 = vmatpush.msra.mxu0 0.0
    %67 = vmatpush.msra.mxu0 0.0
    %68 = vmatpush.msra.mxu0 0.0
    %69 = vmatpush.msra.mxu0 0.0
    %70 = vmatpush.msra.mxu0 0.0
    %71 = vmatpush.msra.mxu0 %v50
    %72 = vmatpush.msra.mxu0 %v49
    %73 = vmatmul.f32.gmra.mxu0 %v52
    %v74 = vpop.f32.mrf.mxu0
    %v75 = vadd.f32 0.0, %v74
    %76 = vmatmul.f32.gmra.mxu0 %v55
    %v77 = vpop.f32.mrf.mxu0
    %v78 = vadd.f32 0.0, %v77
    %79 = vdwg.mxu0
    %v80 = vand.u32 2147483647, %v75
    %v81 = vand.u32 2147483647, %v78
    %vm82 = vcmask 64512
    %v83 = vsel %vm82, %v80, 0.0
    %v84 = vsel %vm82, %v81, 0.0
    %v85 = vadd.f32 %v83, %v84
    %86 = vadd.xlane.f32.xlu0 %v85
    %v87 = vpop.xlane.xlu0 %86
    %v88 = vrot.slane %v87, 4
    %v89 = vadd.f32 %v87, %v88
    %v90 = vrot.slane %v89, 2
    %v91 = vadd.f32 %v89, %v90
    %v92 = vrot.slane %v91, 1
    %v93 = vadd.f32 %v91, %v92
    %s94 = vtos %v93
    %v95 = vstv %s94
    %v96 = vmul.f32 %v95, 0.0078125
    %v97 = vadd.f32 %v96, 0.0
    %98 = vst.msk [vmem:[#allocation2] sm:$0xff] %vm82, %v75
    %99 = vst.msk [vmem:[#allocation2 + $0x8] sm:$0xff] %vm82, %v78
    %v100 = vld [vmem:[#allocation2] ss:$2 sm:$0xff]
    %v101 = vld [vmem:[%s41] ss:$2 sm:$0xff]
    %v102 = vadd.f32 %v100, %v101
    %v103 = vmul.f32 %v102, 0.5
    %v104 = vld [vmem:[%s3] sm:$0xff]
    %v106 = vsel %vm82, %v103, 0
    %108 = vmatpush.msra.mxu0 0.0
    %109 = vmatpush.msra.mxu0 0.0
    %110 = vmatpush.msra.mxu0 0.0
    %111 = vmatpush.msra.mxu0 0.0
    %112 = vmatpush.msra.mxu0 0.0
    %113 = vmatpush.msra.mxu0 0.0
    %114 = vmatpush.msra.mxu0 0.0
    %115 = vmatpush.msra.mxu0 0.0
    %116 = vmatpush.msra.mxu0 0.0
    %117 = vmatpush.msra.mxu0 0.0
    %118 = vmatpush.msra.mxu0 0.0
    %119 = vmatpush.msra.mxu0 0.0
    %120 = vmatpush.msra.mxu0 0.0
    %121 = vmatpush.msra.mxu0 0.0
    %122 = vmatpush.msra.mxu0 0.0
    %123 = vmatpush.msra.mxu0 %v104
    %124 = vmatmul.f32.gmra.mxu0 %v106
    %v125 = vpop.f32.mrf.mxu0
    %v126 = vadd.f32 0.0, %v125
    %127 = vdwg.mxu0
    %v128 = vand.u32 2147483647, %v126
    %vm129 = vcmask 31744
    %v130 = vsel %vm129, %v128, 0.0
    %131 = vadd.xlane.f32.xlu0 %v130
    %v132 = vpop.xlane.xlu0 %131
    %v133 = vrot.slane %v132, 4
    %v134 = vadd.f32 %v132, %v133
    %v135 = vrot.slane %v134, 2
    %v136 = vadd.f32 %v134, %v135
    %v137 = vrot.slane %v136, 1
    %v138 = vadd.f32 %v136, %v137
    %s139 = vtos %v138
    %v140 = vstv %s139
    %v141 = vmul.f32 %v140, 0.015625
    %v142 = vadd.f32 %v97, %v141
    %143 = vst.msk [vmem:[#allocation2] sm:$0xff] %vm129, %v126
    %v144 = vld [vmem:[#allocation2] ss:$2 sm:$0xf]
    %v145 = vld [vmem:[%s41] ss:$2 sm:$0xf]
    %v146 = vadd.f32 %v144, %v145
    %v147 = vmul.f32 %v146, 0.5
    %v148 = vld [vmem:[%s4] sm:$0xf]
    %v150 = vsel %vm129, %v147, 0
    %vm152 = vcmask 1043456
    %v154 = vsel %vm152, %v148, 0
    %156 = vmatpush.msra.mxu0 0.0
    %157 = vmatpush.msra.mxu0 0.0
    %158 = vmatpush.msra.mxu0 0.0
    %159 = vmatpush.msra.mxu0 0.0
    %160 = vmatpush.msra.mxu0 0.0
    %161 = vmatpush.msra.mxu0 0.0
    %162 = vmatpush.msra.mxu0 0.0
    %163 = vmatpush.msra.mxu0 0.0
    %164 = vmatpush.msra.mxu0 0.0
    %165 = vmatpush.msra.mxu0 0.0
    %166 = vmatpush.msra.mxu0 0.0
    %167 = vmatpush.msra.mxu0 0.0
    %168 = vmatpush.msra.mxu0 0.0
    %169 = vmatpush.msra.mxu0 0.0
    %170 = vmatpush.msra.mxu0 0.0
    %171 = vmatpush.msra.mxu0 %v154
    %172 = vmatmul.f32.gmra.mxu0 %v150
    %v173 = vpop.f32.mrf.mxu0
    %v174 = vadd.f32 0.0, %v173
    %175 = vdwg.mxu0
    %v176 = vand.u32 2147483647, %v174
    %vm177 = vcmask 11264
    %v178 = vsel %vm177, %v176, 0.0
    %179 = vadd.xlane.f32.xlu0 %v178
    %v180 = vpop.xlane.xlu0 %179
    %v181 = vrot.slane %v180, 4
    %v182 = vadd.f32 %v180, %v181
    %v183 = vrot.slane %v182, 2
    %v184 = vadd.f32 %v182, %v183
    %v185 = vrot.slane %v184, 1
    %v186 = vadd.f32 %v184, %v185
    %s187 = vtos %v186
    %v188 = vstv %s187
    %v189 = vmul.f32 %v188, 0.03125
    %v190 = vadd.f32 %v142, %v189
    %vm191 = vcmask 0
    %192 = vst.msk [vmem:[#allocation3] sm:$0x1] %vm191, %v190
    // Predicated region
    $region22: #{tpu_custom_call.1} parent=1 // pred_check
      _
    $region23: #{tpu_custom_call.1} parent=1 // pred_check_branch
      %194 = sbr.rel (0) target = $region25
    $region24: #{tpu_custom_call.1} parent=1 // pred_region
      %196 = vsyncadd [#allocation4], 0
      %s198 = sshll.u32 [#allocation3], 4
      %s199 = int_to_ptr.vmem [resolvable:$true] %s198
      %s200 = sshll.u32 %s5, 4
      %s201 = int_to_ptr.hbm [resolvable:$true] %s200
      %203 = dma.vmem_to_hbm [thread:$0]  %s199, 16, %s201, [#allocation4]
    $region25: #{tpu_custom_call.1} parent=1 // pred_fallthru
      _
    // Predicated region
    $region26: #{tpu_custom_call.1} parent=1 // pred_check
      _
    $region27: #{tpu_custom_call.1} parent=1 // pred_check_branch
      %205 = sbr.rel (0) target = $region29
    $region28: #{tpu_custom_call.1} parent=1 // pred_region
      %207 = dma.done [#allocation4], 16
    $region29: #{tpu_custom_call.1} parent=1 // pred_fallthru
      _
    %208 = vsyncpa [#allocation4], 1

</llo_original>
